<compile_context>
chip_gen: v7x
topology: tpu7x:2x2x1
jax: 0.10.0
libtpu: 0.0.40
codegen_flags: <defaults>
</compile_context>

<pallas_src>
import jax
import jax.numpy as jnp
from jax.experimental import pallas as pl
from jax.experimental.pallas import tpu as pltpu


def _prod_last_axis_kernel(x_ref, o_ref):
    # x_ref: (TR, W) block of independent rows; o_ref: (TR, 1) row products.
    x = x_ref[...]
    # Lane-halving multiply tree: product over axis=1 in ceil(log2(W)) steps.
    while x.shape[1] > 1:
        w = x.shape[1]
        half = w // 2
        y = x[:, :half] * x[:, half:2 * half]
        if w % 2:  # fold the odd leftover column back in (not hit for W=16)
            y = jnp.concatenate([y, x[:, 2 * half:]], axis=1)
        x = y
    o_ref[...] = x  # (TR, 1)


def dconv_dend(x):
    """x: (N, C, H, W). Returns prod over dim 3 -> (N, C, H), matching torch.prod(x, 3)."""
    N, C, H, W = x.shape
    R = N * C * H
    x2d = x.reshape(R, W)  # free reshape: rows (n, c, h) are independent

    # Rows per grid step: target ~2 MiB of lane-padded input block per buffer,
    # so double-buffered input + output blocks stay far below even v5e's
    # 16 MiB scoped-VMEM default while each step still moves MB-scale data.
    lanes_padded = ((W + 127) // 128) * 128
    tr = (2 * 1024 * 1024) // (lanes_padded * 4)
    tr = max(8, (tr // 8) * 8)           # sublane-aligned row count
    if R <= tr:
        tr = R                           # small problems: a single grid step
    grid = (pl.cdiv(R, tr),)

    itemsize = jnp.dtype(x.dtype).itemsize
    out2d = pl.pallas_call(
        _prod_last_axis_kernel,
        out_shape=jax.ShapeDtypeStruct((R, 1), x.dtype),
        grid_spec=pltpu.PrefetchScalarGridSpec(
            num_scalar_prefetch=0,
            grid=grid,
            in_specs=[pl.BlockSpec((tr, W), lambda i: (i, 0))],
            out_specs=pl.BlockSpec((tr, 1), lambda i: (i, 0)),
        ),
        compiler_params=pltpu.CompilerParams(
            # Rows are independent -> parallel axis; lets v7x's 2 TCs split work.
            dimension_semantics=("parallel",),
            vmem_limit_bytes=32 * 1024 * 1024,
        ),
        cost_estimate=pl.CostEstimate(
            flops=R * max(W - 1, 0),
            transcendentals=0,
            bytes_accessed=(R * W + R) * itemsize,
        ),
    )(x2d)

    return out2d.reshape(N, C, H)


def _reference(x):
    """Pure-JAX reference of the PyTorch forward (torch.prod(x, 3))."""
    return jnp.prod(x, axis=3)


if __name__ == "__main__":
    key = jax.random.PRNGKey(0)
    N, C, H, W = 2, 4, 16, 16
    # values near 1 so the 16-factor product stays well-scaled in f32
    x = jax.random.uniform(key, (N, C, H, W), jnp.float32, minval=0.5, maxval=1.5)

    out = jax.block_until_ready(dconv_dend(x))

    ref = _reference(x)
    assert out.shape == (N, C, H), out.shape
    assert jnp.allclose(out, ref, rtol=1e-5, atol=1e-6), "Pallas output mismatch vs JAX reference"
    print("KERNEL_OK")
</pallas_src>

<mosaic_0001>
module attributes {stable_mosaic.version = 11 : i64} {
  func.func @_prod_last_axis_kernel(%arg0: i32, %arg1: memref<128x16xf32, #tpu.memory_space<vmem>>, %arg2: memref<128x1xf32, #tpu.memory_space<vmem>>) attributes {dimension_semantics = [#tpu.dimension_semantics<parallel>], iteration_bounds = array<i64: 1>, scalar_prefetch = 0 : i64, scratch_operands = 0 : i64, tpu.core_type = #tpu.core_type<tc>, window_params = [{transform_indices = @transform_0, window_bounds = array<i64: 128, 16>}, {transform_indices = @transform_1, window_bounds = array<i64: 128, 1>}]} {
    %c0 = arith.constant 0 : index
    %c0_0 = arith.constant 0 : index
    %0 = vector.load %arg1[%c0, %c0_0] : memref<128x16xf32, #tpu.memory_space<vmem>>, vector<128x16xf32>
    %1 = vector.extract_strided_slice %0 {offsets = [0, 0], sizes = [128, 8], strides = [1, 1]} : vector<128x16xf32> to vector<128x8xf32>
    %2 = vector.extract_strided_slice %0 {offsets = [0, 8], sizes = [128, 8], strides = [1, 1]} : vector<128x16xf32> to vector<128x8xf32>
    %3 = arith.mulf %1, %2 : vector<128x8xf32>
    %4 = vector.extract_strided_slice %3 {offsets = [0, 0], sizes = [128, 4], strides = [1, 1]} : vector<128x8xf32> to vector<128x4xf32>
    %5 = vector.extract_strided_slice %3 {offsets = [0, 4], sizes = [128, 4], strides = [1, 1]} : vector<128x8xf32> to vector<128x4xf32>
    %6 = arith.mulf %4, %5 : vector<128x4xf32>
    %7 = vector.extract_strided_slice %6 {offsets = [0, 0], sizes = [128, 2], strides = [1, 1]} : vector<128x4xf32> to vector<128x2xf32>
    %8 = vector.extract_strided_slice %6 {offsets = [0, 2], sizes = [128, 2], strides = [1, 1]} : vector<128x4xf32> to vector<128x2xf32>
    %9 = arith.mulf %7, %8 : vector<128x2xf32>
    %10 = vector.extract_strided_slice %9 {offsets = [0, 0], sizes = [128, 1], strides = [1, 1]} : vector<128x2xf32> to vector<128x1xf32>
    %11 = vector.extract_strided_slice %9 {offsets = [0, 1], sizes = [128, 1], strides = [1, 1]} : vector<128x2xf32> to vector<128x1xf32>
    %12 = arith.mulf %10, %11 : vector<128x1xf32>
    %c0_1 = arith.constant 0 : index
    %c0_2 = arith.constant 0 : index
    %13 = vector.load %arg2[%c0_1, %c0_2] : memref<128x1xf32, #tpu.memory_space<vmem>>, vector<128x1xf32>
    tpu.vector_store %arg2[%c0_1, %c0_2], %12 {strides = array<i32>} : memref<128x1xf32, #tpu.memory_space<vmem>>, vector<128x1xf32>,
    return
  }
  func.func @transform_0(%arg0: i32) -> (i32, i32) {
    %c0_i32 = arith.constant 0 : i32
    %c0_i32_0 = arith.constant 0 : i32
    return %arg0, %c0_i32 : i32, i32
  }
  func.func @transform_1(%arg0: i32) -> (i32, i32) {
    %c0_i32 = arith.constant 0 : i32
    %c0_i32_0 = arith.constant 0 : i32
    return %arg0, %c0_i32 : i32, i32
  }
}

</mosaic_0001>

<llo_original>
// kernel: tpu_custom_call.1
$region0: #{tpu_custom_call.1}
  #allocation0 [shape = 'u32[]', space=smem, size = 0x4, offset = 0x4, fixed_abs, tag = 'smem constant byte address 0x4 - core index']
  #allocation1 [shape = 'u32[144,128]{1,0:T(1,128)}', space=vmem, size = 0x12000, scoped, tag = 'internal scratch']
  %s0 = inlined_call_operand.vmem [shape: f32[128,16], index: 0, kind: input, shape index: {}]
  %s1 = inlined_call_operand.vmem [shape: f32[128,1], index: 1, kind: output, shape index: {}]
  %s2 = sld [smem:[#allocation0]]
  $region14: #{tpu_custom_call.1} parent=0
    _
  %s4 = ssub.s32 1, %s2
  %s5 = scalar_select 0, %s4, %s2
  // Predicated region
  $region2: #{tpu_custom_call.1} parent=0 // pred_check
    _
  $region3: #{tpu_custom_call.1} parent=0 // pred_check_branch
    %7 = sbr.rel (0) target = $region5
  $region4: #{tpu_custom_call.1} parent=0 // pred_region
    _
  $region5: #{tpu_custom_call.1} parent=0 // pred_fallthru
    _
  %v8 = vld [vmem:[%s0] sm:$0xff]
  %v9 = vld [vmem:[%s0 + $0x8] sm:$0xff]
  %v10 = vld [vmem:[%s0 + $0x10] sm:$0xff]
  %v11 = vld [vmem:[%s0 + $0x18] sm:$0xff]
  %v12 = vld [vmem:[%s0 + $0x20] sm:$0xff]
  %v13 = vld [vmem:[%s0 + $0x28] sm:$0xff]
  %v14 = vld [vmem:[%s0 + $0x30] sm:$0xff]
  %v15 = vld [vmem:[%s0 + $0x38] sm:$0xff]
  %v16 = vld [vmem:[%s0 + $0x40] sm:$0xff]
  %v17 = vld [vmem:[%s0 + $0x48] sm:$0xff]
  %v18 = vld [vmem:[%s0 + $0x50] sm:$0xff]
  %v19 = vld [vmem:[%s0 + $0x58] sm:$0xff]
  %v20 = vld [vmem:[%s0 + $0x60] sm:$0xff]
  %v21 = vld [vmem:[%s0 + $0x68] sm:$0xff]
  %v22 = vld [vmem:[%s0 + $0x70] sm:$0xff]
  %v23 = vld [vmem:[%s0 + $0x78] sm:$0xff]
  %40 = vrot.lane.b32.xlu0 %v8, 120
  %v41 = vpop.permute.xlu0 %40
  %42 = vrot.lane.b32.xlu0 %v9, 120
  %v43 = vpop.permute.xlu0 %42
  %44 = vrot.lane.b32.xlu0 %v10, 120
  %v45 = vpop.permute.xlu0 %44
  %46 = vrot.lane.b32.xlu0 %v11, 120
  %v47 = vpop.permute.xlu0 %46
  %48 = vrot.lane.b32.xlu0 %v12, 120
  %v49 = vpop.permute.xlu0 %48
  %50 = vrot.lane.b32.xlu0 %v13, 120
  %v51 = vpop.permute.xlu0 %50
  %52 = vrot.lane.b32.xlu0 %v14, 120
  %v53 = vpop.permute.xlu0 %52
  %54 = vrot.lane.b32.xlu0 %v15, 120
  %v55 = vpop.permute.xlu0 %54
  %56 = vrot.lane.b32.xlu0 %v16, 120
  %v57 = vpop.permute.xlu0 %56
  %58 = vrot.lane.b32.xlu0 %v17, 120
  %v59 = vpop.permute.xlu0 %58
  %60 = vrot.lane.b32.xlu0 %v18, 120
  %v61 = vpop.permute.xlu0 %60
  %62 = vrot.lane.b32.xlu0 %v19, 120
  %v63 = vpop.permute.xlu0 %62
  %64 = vrot.lane.b32.xlu0 %v20, 120
  %v65 = vpop.permute.xlu0 %64
  %66 = vrot.lane.b32.xlu0 %v21, 120
  %v67 = vpop.permute.xlu0 %66
  %68 = vrot.lane.b32.xlu0 %v22, 120
  %v69 = vpop.permute.xlu0 %68
  %70 = vrot.lane.b32.xlu0 %v23, 120
  %v71 = vpop.permute.xlu0 %70
  %v88 = vmul.f32 %v8, %v41
  %v89 = vmul.f32 %v9, %v43
  %v90 = vmul.f32 %v10, %v45
  %v91 = vmul.f32 %v11, %v47
  %v92 = vmul.f32 %v12, %v49
  %v93 = vmul.f32 %v13, %v51
  %v94 = vmul.f32 %v14, %v53
  %v95 = vmul.f32 %v15, %v55
  %v96 = vmul.f32 %v16, %v57
  %v97 = vmul.f32 %v17, %v59
  %v98 = vmul.f32 %v18, %v61
  %v99 = vmul.f32 %v19, %v63
  %v100 = vmul.f32 %v20, %v65
  %v101 = vmul.f32 %v21, %v67
  %v102 = vmul.f32 %v22, %v69
  %v103 = vmul.f32 %v23, %v71
  %120 = vrot.lane.b32.xlu0 %v88, 124
  %v121 = vpop.permute.xlu0 %120
  %122 = vrot.lane.b32.xlu0 %v89, 124
  %v123 = vpop.permute.xlu0 %122
  %124 = vrot.lane.b32.xlu0 %v90, 124
  %v125 = vpop.permute.xlu0 %124
  %126 = vrot.lane.b32.xlu0 %v91, 124
  %v127 = vpop.permute.xlu0 %126
  %128 = vrot.lane.b32.xlu0 %v92, 124
  %v129 = vpop.permute.xlu0 %128
  %130 = vrot.lane.b32.xlu0 %v93, 124
  %v131 = vpop.permute.xlu0 %130
  %132 = vrot.lane.b32.xlu0 %v94, 124
  %v133 = vpop.permute.xlu0 %132
  %134 = vrot.lane.b32.xlu0 %v95, 124
  %v135 = vpop.permute.xlu0 %134
  %136 = vrot.lane.b32.xlu0 %v96, 124
  %v137 = vpop.permute.xlu0 %136
  %138 = vrot.lane.b32.xlu0 %v97, 124
  %v139 = vpop.permute.xlu0 %138
  %140 = vrot.lane.b32.xlu0 %v98, 124
  %v141 = vpop.permute.xlu0 %140
  %142 = vrot.lane.b32.xlu0 %v99, 124
  %v143 = vpop.permute.xlu0 %142
  %144 = vrot.lane.b32.xlu0 %v100, 124
  %v145 = vpop.permute.xlu0 %144
  %146 = vrot.lane.b32.xlu0 %v101, 124
  %v147 = vpop.permute.xlu0 %146
  %148 = vrot.lane.b32.xlu0 %v102, 124
  %v149 = vpop.permute.xlu0 %148
  %150 = vrot.lane.b32.xlu0 %v103, 124
  %v151 = vpop.permute.xlu0 %150
  %v168 = vmul.f32 %v88, %v121
  %v169 = vmul.f32 %v89, %v123
  %v170 = vmul.f32 %v90, %v125
  %v171 = vmul.f32 %v91, %v127
  %v172 = vmul.f32 %v92, %v129
  %v173 = vmul.f32 %v93, %v131
  %v174 = vmul.f32 %v94, %v133
  %v175 = vmul.f32 %v95, %v135
  %v176 = vmul.f32 %v96, %v137
  %v177 = vmul.f32 %v97, %v139
  %v178 = vmul.f32 %v98, %v141
  %v179 = vmul.f32 %v99, %v143
  %v180 = vmul.f32 %v100, %v145
  %v181 = vmul.f32 %v101, %v147
  %v182 = vmul.f32 %v102, %v149
  %v183 = vmul.f32 %v103, %v151
  %200 = vrot.lane.b32.xlu0 %v168, 126
  %v201 = vpop.permute.xlu0 %200
  %202 = vrot.lane.b32.xlu0 %v169, 126
  %v203 = vpop.permute.xlu0 %202
  %204 = vrot.lane.b32.xlu0 %v170, 126
  %v205 = vpop.permute.xlu0 %204
  %206 = vrot.lane.b32.xlu0 %v171, 126
  %v207 = vpop.permute.xlu0 %206
  %208 = vrot.lane.b32.xlu0 %v172, 126
  %v209 = vpop.permute.xlu0 %208
  %210 = vrot.lane.b32.xlu0 %v173, 126
  %v211 = vpop.permute.xlu0 %210
  %212 = vrot.lane.b32.xlu0 %v174, 126
  %v213 = vpop.permute.xlu0 %212
  %214 = vrot.lane.b32.xlu0 %v175, 126
  %v215 = vpop.permute.xlu0 %214
  %216 = vrot.lane.b32.xlu0 %v176, 126
  %v217 = vpop.permute.xlu0 %216
  %218 = vrot.lane.b32.xlu0 %v177, 126
  %v219 = vpop.permute.xlu0 %218
  %220 = vrot.lane.b32.xlu0 %v178, 126
  %v221 = vpop.permute.xlu0 %220
  %222 = vrot.lane.b32.xlu0 %v179, 126
  %v223 = vpop.permute.xlu0 %222
  %224 = vrot.lane.b32.xlu0 %v180, 126
  %v225 = vpop.permute.xlu0 %224
  %226 = vrot.lane.b32.xlu0 %v181, 126
  %v227 = vpop.permute.xlu0 %226
  %228 = vrot.lane.b32.xlu0 %v182, 126
  %v229 = vpop.permute.xlu0 %228
  %230 = vrot.lane.b32.xlu0 %v183, 126
  %v231 = vpop.permute.xlu0 %230
  %v248 = vmul.f32 %v168, %v201
  %v249 = vmul.f32 %v169, %v203
  %v250 = vmul.f32 %v170, %v205
  %v251 = vmul.f32 %v171, %v207
  %v252 = vmul.f32 %v172, %v209
  %v253 = vmul.f32 %v173, %v211
  %v254 = vmul.f32 %v174, %v213
  %v255 = vmul.f32 %v175, %v215
  %v256 = vmul.f32 %v176, %v217
  %v257 = vmul.f32 %v177, %v219
  %v258 = vmul.f32 %v178, %v221
  %v259 = vmul.f32 %v179, %v223
  %v260 = vmul.f32 %v180, %v225
  %v261 = vmul.f32 %v181, %v227
  %v262 = vmul.f32 %v182, %v229
  %v263 = vmul.f32 %v183, %v231
  %280 = vrot.lane.b32.xlu0 %v248, 127
  %v281 = vpop.permute.xlu0 %280
  %282 = vrot.lane.b32.xlu0 %v249, 127
  %v283 = vpop.permute.xlu0 %282
  %284 = vrot.lane.b32.xlu0 %v250, 127
  %v285 = vpop.permute.xlu0 %284
  %286 = vrot.lane.b32.xlu0 %v251, 127
  %v287 = vpop.permute.xlu0 %286
  %288 = vrot.lane.b32.xlu0 %v252, 127
  %v289 = vpop.permute.xlu0 %288
  %290 = vrot.lane.b32.xlu0 %v253, 127
  %v291 = vpop.permute.xlu0 %290
  %292 = vrot.lane.b32.xlu0 %v254, 127
  %v293 = vpop.permute.xlu0 %292
  %294 = vrot.lane.b32.xlu0 %v255, 127
  %v295 = vpop.permute.xlu0 %294
  %296 = vrot.lane.b32.xlu0 %v256, 127
  %v297 = vpop.permute.xlu0 %296
  %298 = vrot.lane.b32.xlu0 %v257, 127
  %v299 = vpop.permute.xlu0 %298
  %300 = vrot.lane.b32.xlu0 %v258, 127
  %v301 = vpop.permute.xlu0 %300
  %302 = vrot.lane.b32.xlu0 %v259, 127
  %v303 = vpop.permute.xlu0 %302
  %304 = vrot.lane.b32.xlu0 %v260, 127
  %v305 = vpop.permute.xlu0 %304
  %306 = vrot.lane.b32.xlu0 %v261, 127
  %v307 = vpop.permute.xlu0 %306
  %308 = vrot.lane.b32.xlu0 %v262, 127
  %v309 = vpop.permute.xlu0 %308
  %310 = vrot.lane.b32.xlu0 %v263, 127
  %v311 = vpop.permute.xlu0 %310
  %v328 = vmul.f32 %v248, %v281
  %v329 = vmul.f32 %v249, %v283
  %v330 = vmul.f32 %v250, %v285
  %v331 = vmul.f32 %v251, %v287
  %v332 = vmul.f32 %v252, %v289
  %v333 = vmul.f32 %v253, %v291
  %v334 = vmul.f32 %v254, %v293
  %v335 = vmul.f32 %v255, %v295
  %v336 = vmul.f32 %v256, %v297
  %v337 = vmul.f32 %v257, %v299
  %v338 = vmul.f32 %v258, %v301
  %v339 = vmul.f32 %v259, %v303
  %v340 = vmul.f32 %v260, %v305
  %v341 = vmul.f32 %v261, %v307
  %v342 = vmul.f32 %v262, %v309
  %v343 = vmul.f32 %v263, %v311
  %vm344 = vcmask 7168
  %345 = vst.msk [vmem:[%s1] sm:$0xff] %vm344, %v328
  %346 = vst.msk [vmem:[%s1 + $0x8] sm:$0xff] %vm344, %v329
  %347 = vst.msk [vmem:[%s1 + $0x10] sm:$0xff] %vm344, %v330
  %348 = vst.msk [vmem:[%s1 + $0x18] sm:$0xff] %vm344, %v331
  %349 = vst.msk [vmem:[%s1 + $0x20] sm:$0xff] %vm344, %v332
  %350 = vst.msk [vmem:[%s1 + $0x28] sm:$0xff] %vm344, %v333
  %351 = vst.msk [vmem:[%s1 + $0x30] sm:$0xff] %vm344, %v334
  %352 = vst.msk [vmem:[%s1 + $0x38] sm:$0xff] %vm344, %v335
  %353 = vst.msk [vmem:[%s1 + $0x40] sm:$0xff] %vm344, %v336
  %354 = vst.msk [vmem:[%s1 + $0x48] sm:$0xff] %vm344, %v337
  %355 = vst.msk [vmem:[%s1 + $0x50] sm:$0xff] %vm344, %v338
  %356 = vst.msk [vmem:[%s1 + $0x58] sm:$0xff] %vm344, %v339
  %357 = vst.msk [vmem:[%s1 + $0x60] sm:$0xff] %vm344, %v340
  %358 = vst.msk [vmem:[%s1 + $0x68] sm:$0xff] %vm344, %v341
  %359 = vst.msk [vmem:[%s1 + $0x70] sm:$0xff] %vm344, %v342
  %360 = vst.msk [vmem:[%s1 + $0x78] sm:$0xff] %vm344, %v343
  // Predicated region
  $region6: #{tpu_custom_call.1} parent=0 // pred_check
    _
  $region7: #{tpu_custom_call.1} parent=0 // pred_check_branch
    %362 = sbr.rel (0) target = $region9
  $region8: #{tpu_custom_call.1} parent=0 // pred_region
    _
  $region9: #{tpu_custom_call.1} parent=0 // pred_fallthru
    _
  // Predicated region
  $region10: #{tpu_custom_call.1} parent=0 // pred_check
    _
  $region11: #{tpu_custom_call.1} parent=0 // pred_check_branch
    %364 = sbr.rel (0) target = $region13
  $region12: #{tpu_custom_call.1} parent=0 // pred_region
    _
  $region13: #{tpu_custom_call.1} parent=0 // pred_fallthru
    _

</llo_original>
